<compile_context>
chip_gen: v7x
topology: tpu7x:2x2x1
jax: 0.10.0
libtpu: 0.0.40
codegen_flags: <defaults>
</compile_context>

<pallas_src>
import jax
import jax.numpy as jnp
from jax.experimental import pallas as pl
from jax.experimental.pallas import tpu as pltpu


def _pool_kernel(x_ref, o_ref):
    # x_ref: (R_blk, 2, Wo, 2*C)  -- R_blk output rows; axis 1 = the two source
    #        input rows of each window; the two source columns are folded into
    #        the lane axis as [col0 channels | col1 channels].
    # o_ref: (R_blk, Wo, C)
    x = x_ref[...]
    s = x[:, 0] + x[:, 1]                      # pool over H: plain VPU add
    c = o_ref.shape[-1]
    out = s[..., :c] + s[..., c:]              # pool over W: contiguous lane slices
    o_ref[...] = (out * 0.25).astype(o_ref.dtype)


def _pick_row_block(n_rows: int, row_bytes: int, target_bytes: int = 2 * 1024 * 1024) -> int:
    """Largest divisor of n_rows whose input block fits ~target_bytes, preferring
    >= 2 grid steps so both v7x TensorCores get work."""
    divisors = [d for d in range(1, n_rows + 1) if n_rows % d == 0]
    fitting = [d for d in divisors if d * row_bytes <= target_bytes]
    if not fitting:
        return 1
    multi_step = [d for d in fitting if n_rows // d >= 2]
    return max(multi_step) if multi_step else max(fitting)


def avg_pool_2x2(x: jax.Array) -> jax.Array:
    """2x2 stride-2 average pooling on an NCHW tensor via Pallas (NCHW in/out)."""
    B, C, H, W = x.shape
    assert H % 2 == 0 and W % 2 == 0, "spatial dims must be even for 2x2/2 pooling"
    Ho, Wo = H // 2, W // 2

    # NCHW -> NHWC (layout plumbing so C is the lane axis), then a pure view:
    # (B, H, W, C) -> (B*Ho, 2, Wo, 2*C).
    x_nhwc = jnp.transpose(x, (0, 2, 3, 1))
    x_folded = x_nhwc.reshape(B * Ho, 2, Wo, 2 * C)

    n_rows = B * Ho
    itemsize = x.dtype.itemsize
    row_bytes = 2 * Wo * 2 * C * itemsize      # input bytes per output row
    r_blk = _pick_row_block(n_rows, row_bytes)

    y = pl.pallas_call(
        _pool_kernel,
        out_shape=jax.ShapeDtypeStruct((n_rows, Wo, C), x.dtype),
        grid=(n_rows // r_blk,),
        in_specs=[
            pl.BlockSpec((r_blk, 2, Wo, 2 * C), lambda i: (i, 0, 0, 0)),
        ],
        out_specs=pl.BlockSpec((r_blk, Wo, C), lambda i: (i, 0, 0)),
        compiler_params=pltpu.CompilerParams(
            dimension_semantics=("parallel",),
        ),
    )(x_folded)

    # (B*Ho, Wo, C) -> (B, Ho, Wo, C) -> NCHW
    return jnp.transpose(y.reshape(B, Ho, Wo, C), (0, 3, 1, 2))


class DummyBackbone:
    """JAX/Pallas port of algos/detr/models/backbone.py::DummyBackbone."""

    def __init__(self) -> None:
        self.num_channels = 768
        self.name = "dummy"
        # No parameters to initialize (AvgPool2d is parameter-free).

    def forward(self, tensor: jax.Array):
        od = {}
        od["0"] = avg_pool_2x2(tensor)
        return od

    __call__ = forward


if __name__ == "__main__":
    key = jax.random.PRNGKey(0)
    # Small NCHW input consistent with the module's forward.
    x = jax.random.normal(key, (2, 4, 16, 16), dtype=jnp.float32)

    backbone = DummyBackbone()
    out = backbone(x)
    pooled = jax.block_until_ready(out["0"])

    # Reference: plain-JAX 2x2 average pool.
    ref = x.reshape(2, 4, 8, 2, 8, 2).mean(axis=(3, 5))
    assert pooled.shape == (2, 4, 8, 8)
    assert pooled.dtype == x.dtype
    assert jnp.allclose(pooled, ref, atol=1e-6, rtol=1e-6)

    print("KERNEL_OK")
</pallas_src>

<mosaic_0001>
module attributes {stable_mosaic.version = 11 : i64} {
  func.func @_pool_kernel(%arg0: i32, %arg1: memref<8x2x8x8xf32, #tpu.memory_space<vmem>>, %arg2: memref<8x8x4xf32, #tpu.memory_space<vmem>>) attributes {dimension_semantics = [#tpu.dimension_semantics<parallel>], iteration_bounds = array<i64: 2>, scalar_prefetch = 0 : i64, scratch_operands = 0 : i64, tpu.core_type = #tpu.core_type<tc>, window_params = [{transform_indices = @transform_0, window_bounds = array<i64: 8, 2, 8, 8>}, {transform_indices = @transform_1, window_bounds = array<i64: 8, 8, 4>}]} {
    %c0 = arith.constant 0 : index
    %c0_0 = arith.constant 0 : index
    %c0_1 = arith.constant 0 : index
    %c0_2 = arith.constant 0 : index
    %0 = vector.load %arg1[%c0, %c0_0, %c0_1, %c0_2] : memref<8x2x8x8xf32, #tpu.memory_space<vmem>>, vector<8x2x8x8xf32>
    %1 = vector.extract_strided_slice %0 {offsets = [0, 0, 0, 0], sizes = [8, 1, 8, 8], strides = [1, 1, 1, 1]} : vector<8x2x8x8xf32> to vector<8x1x8x8xf32>
    %2 = vector.shape_cast %1 : vector<8x1x8x8xf32> to vector<8x8x8xf32>
    %3 = vector.extract_strided_slice %0 {offsets = [0, 1, 0, 0], sizes = [8, 1, 8, 8], strides = [1, 1, 1, 1]} : vector<8x2x8x8xf32> to vector<8x1x8x8xf32>
    %4 = vector.shape_cast %3 : vector<8x1x8x8xf32> to vector<8x8x8xf32>
    %5 = arith.addf %2, %4 : vector<8x8x8xf32>
    %6 = vector.extract_strided_slice %5 {offsets = [0, 0, 0], sizes = [8, 8, 4], strides = [1, 1, 1]} : vector<8x8x8xf32> to vector<8x8x4xf32>
    %7 = vector.extract_strided_slice %5 {offsets = [0, 0, 4], sizes = [8, 8, 4], strides = [1, 1, 1]} : vector<8x8x8xf32> to vector<8x8x4xf32>
    %8 = arith.addf %6, %7 : vector<8x8x4xf32>
    %cst = arith.constant 2.500000e-01 : f32
    %9 = vector.broadcast %cst : f32 to vector<8x8x4xf32>
    %10 = arith.mulf %8, %9 : vector<8x8x4xf32>
    %c0_3 = arith.constant 0 : index
    %c0_4 = arith.constant 0 : index
    %c0_5 = arith.constant 0 : index
    %11 = vector.load %arg2[%c0_3, %c0_4, %c0_5] : memref<8x8x4xf32, #tpu.memory_space<vmem>>, vector<8x8x4xf32>
    tpu.vector_store %arg2[%c0_3, %c0_4, %c0_5], %10 {strides = array<i32>} : memref<8x8x4xf32, #tpu.memory_space<vmem>>, vector<8x8x4xf32>,
    return
  }
  func.func @transform_0(%arg0: i32) -> (i32, i32, i32, i32) {
    %c0_i32 = arith.constant 0 : i32
    %c0_i32_0 = arith.constant 0 : i32
    %c0_i32_1 = arith.constant 0 : i32
    %c0_i32_2 = arith.constant 0 : i32
    return %arg0, %c0_i32, %c0_i32_0, %c0_i32_1 : i32, i32, i32, i32
  }
  func.func @transform_1(%arg0: i32) -> (i32, i32, i32) {
    %c0_i32 = arith.constant 0 : i32
    %c0_i32_0 = arith.constant 0 : i32
    %c0_i32_1 = arith.constant 0 : i32
    return %arg0, %c0_i32, %c0_i32_0 : i32, i32, i32
  }
}

</mosaic_0001>

<llo_original>
// kernel: tpu_custom_call.1
$region0: #{tpu_custom_call.1}
  #allocation0 [shape = 'u32[]', space=smem, size = 0x4, offset = 0x4, fixed_abs, tag = 'smem constant byte address 0x4 - core index']
  #allocation1 [shape = 'u32[144,128]{1,0:T(1,128)}', space=vmem, size = 0x12000, scoped, tag = 'internal scratch']
  %s0 = inlined_call_operand.vmem [shape: f32[16,2,8,8], index: 0, kind: input, shape index: {}]
  %s1 = inlined_call_operand.vmem [shape: f32[16,8,4], index: 1, kind: output, shape index: {}]
  %s2 = sld [smem:[#allocation0]]
  $region37: #{tpu_custom_call.1} parent=0
    _
  %s4 = ssub.s32 1, %s2
  %s5 = scalar_select 0, %s4, %s2
  loop: start=0, step=1, limit=4
  $region2: #{tpu_custom_call.1} parent=0 // loop_pre_header
    _
  $region3: #{tpu_custom_call.1} parent=0 // loop_header
    %s7 = sphi 0, %s11
    %p8 = scmp.ge.s32.totalorder %s7, 4
    %s17 = sphi 0, %s19
    %s20 = sphi 0, %s17
    %s21 = sphi 0, %s20
    %s37 = sphi 0, %s21
    %s43 = sphi 0, %s45
    %s46 = sphi 0, %s43
    %s47 = sphi 0, %s46
    %s63 = sphi 0, %s47
  $region4: #{tpu_custom_call.1} parent=0 // loop_header_branch
    %10 = sbr.rel (%p8) target = $region8
  $region5: #{tpu_custom_call.1} parent=0 // loop_body
    %s12 = ssub.s32 %s7, 1
    %s13 = ssub.s32 %s7, 2
    %s14 = sadd.s32 %s7, 1
    %s15 = ssub.s32 %s7, %s14
    %p16 = scmp.eq.s32.totalorder %s15, 0
    %s18 = sadd.s32 %s17, 1
    %s19 = scalar_select %p16, %s17, %s18
    %p22 = pneg %p16
    %p23 = scmp.eq.s32.totalorder %s7, 1
    %p24 = por %p22, %p23
    %p25 = scmp.ne.s32.totalorder %s17, %s20
    %p26 = scmp.eq.s32.totalorder %s7, 0
    %p27 = por %p25, %p26
    %p28 = scmp.ne.s32.totalorder %s17, %s20
    %p29 = scmp.eq.s32.totalorder %s12, 1
    %p30 = por %p28, %p29
    %p31 = scmp.ne.s32.totalorder %s20, %s21
    %p32 = scmp.eq.s32.totalorder %s12, 0
    %p33 = por %p31, %p32
    %p34 = scmp.ne.s32.totalorder %s20, %s21
    %p35 = scmp.eq.s32.totalorder %s13, 1
    %p36 = por %p34, %p35
    %p38 = scmp.ne.s32.totalorder %s21, %s37
    %p39 = scmp.eq.s32.totalorder %s13, 0
    %p40 = por %p38, %p39
    %s41 = ssub.s32 %s7, %s14
    %p42 = scmp.eq.s32.totalorder %s41, 0
    %s44 = sadd.s32 %s43, 1
    %s45 = scalar_select %p42, %s43, %s44
    %p48 = pneg %p42
    %p49 = scmp.eq.s32.totalorder %s7, 1
    %p50 = por %p48, %p49
    %p51 = scmp.ne.s32.totalorder %s43, %s46
    %p52 = scmp.eq.s32.totalorder %s7, 0
    %p53 = por %p51, %p52
    %p54 = scmp.ne.s32.totalorder %s43, %s46
    %p55 = scmp.eq.s32.totalorder %s12, 1
    %p56 = por %p54, %p55
    %p57 = scmp.ne.s32.totalorder %s46, %s47
    %p58 = scmp.eq.s32.totalorder %s12, 0
    %p59 = por %p57, %p58
    %p60 = scmp.ne.s32.totalorder %s46, %s47
    %p61 = scmp.eq.s32.totalorder %s13, 1
    %p62 = por %p60, %p61
    %p64 = scmp.ne.s32.totalorder %s47, %s63
    %p65 = scmp.eq.s32.totalorder %s13, 0
    %p66 = por %p64, %p65
    %p67 = scmp.le.s32.totalorder 1, %s7
    %p68 = scmp.lt.s32.totalorder %s7, 3
    %p69 = pnand %p67, %p68
    %p70 = pneg %p69
    // Predicated region
    $region9: #{tpu_custom_call.1} parent=5 // pred_check
      _
    $region10: #{tpu_custom_call.1} parent=5 // pred_check_branch
      %72 = sbr.rel (%p69) target = $region12
    $region11: #{tpu_custom_call.1} parent=5 // pred_region
      %s73 = ssub.s32 %s7, 1
    $region12: #{tpu_custom_call.1} parent=5 // pred_fallthru
      _
    %p74 = scmp.lt.s32.totalorder %s7, 2
    // Predicated region
    $region13: #{tpu_custom_call.1} parent=5 // pred_check
      %p75 = pneg %p74
    $region14: #{tpu_custom_call.1} parent=5 // pred_check_branch
      %77 = sbr.rel (%p75) target = $region16
    $region15: #{tpu_custom_call.1} parent=5 // pred_region
      // Predicated region
      $region17: #{tpu_custom_call.1} parent=15 // pred_check
        %p78 = pneg %p27
      $region18: #{tpu_custom_call.1} parent=15 // pred_check_branch
        %80 = sbr.rel (%p78) target = $region20
      $region19: #{tpu_custom_call.1} parent=15 // pred_region
        %s81 = smul.u32 8, %s7
        %p82 = scmp.lt.s32.totalorder %s81, 15
        %s83 = scalar_select %p82, %s81, 15
        %s84 = smul.addr %s83, 2
        %s85 = smul.addr %s84, 8
        %s86 = scalar_lea.vmem %s0, %s85
        %s87 = smul.u32 8, %s7
      $region20: #{tpu_custom_call.1} parent=15 // pred_fallthru
        _
    $region16: #{tpu_custom_call.1} parent=5 // pred_fallthru
      _
    %p88 = scmp.le.s32.totalorder 1, %s7
    %p89 = scmp.lt.s32.totalorder %s7, 3
    %p90 = pnand %p88, %p89
    %p91 = pneg %p90
    // Predicated region
    $region21: #{tpu_custom_call.1} parent=5 // pred_check
      _
    $region22: #{tpu_custom_call.1} parent=5 // pred_check_branch
      %93 = sbr.rel (%p90) target = $region24
    $region23: #{tpu_custom_call.1} parent=5 // pred_region
      %s94 = ssub.s32 %s7, 1
      %s95 = smul.u32 8, %s12
      %p96 = scmp.lt.s32.totalorder %s95, 15
      %s97 = scalar_select %p96, %s95, 15
      %s98 = smul.addr %s97, 2
      %s99 = smul.addr %s98, 8
      %s100 = scalar_lea.vmem %s0, %s99
      %p101 = pneg %p33
      %p102 = pneg %p30
      %p103 = pneg %p59
      %p104 = pneg %p56
      %s105 = smul.u32 8, %s12
      %p106 = scmp.lt.s32.totalorder %s105, 15
      %s107 = scalar_select %p106, %s105, 15
      %s108 = smul.addr %s107, 8
      %s109 = scalar_lea.vmem %s1, %s108
      %s110 = smul.u32 8, %s12
      %p111 = scmp.lt.s32.totalorder %s110, 15
      %s112 = scalar_select %p111, %s110, 15
      %s113 = smul.addr %s112, 2
      %s114 = smul.addr %s113, 8
      %s115 = scalar_lea.vmem %s0, %s114
      %s116 = smul.u32 8, %s12
      %s117 = smul.u32 8, %s12
      %p118 = scmp.lt.s32.totalorder %s117, 15
      %s119 = scalar_select %p118, %s117, 15
      %s120 = smul.addr %s119, 8
      %s121 = scalar_lea.vmem %s1, %s120
      %s122 = smul.u32 8, %s12
      %v123 = vld [vmem:[%s115] sm:$0xff]
      %v124 = vld [vmem:[%s115 + $0x8] sm:$0xff]
      %v125 = vld [vmem:[%s115 + $0x10] sm:$0xff]
      %v126 = vld [vmem:[%s115 + $0x18] sm:$0xff]
      %v127 = vld [vmem:[%s115 + $0x20] sm:$0xff]
      %v128 = vld [vmem:[%s115 + $0x28] sm:$0xff]
      %v129 = vld [vmem:[%s115 + $0x30] sm:$0xff]
      %v130 = vld [vmem:[%s115 + $0x38] sm:$0xff]
      %v131 = vld [vmem:[%s115 + $0x40] sm:$0xff]
      %v132 = vld [vmem:[%s115 + $0x48] sm:$0xff]
      %v133 = vld [vmem:[%s115 + $0x50] sm:$0xff]
      %v134 = vld [vmem:[%s115 + $0x58] sm:$0xff]
      %v135 = vld [vmem:[%s115 + $0x60] sm:$0xff]
      %v136 = vld [vmem:[%s115 + $0x68] sm:$0xff]
      %v137 = vld [vmem:[%s115 + $0x70] sm:$0xff]
      %v138 = vld [vmem:[%s115 + $0x78] sm:$0xff]
      %v139 = vadd.f32 %v123, %v124
      %v140 = vadd.f32 %v125, %v126
      %v141 = vadd.f32 %v127, %v128
      %v142 = vadd.f32 %v129, %v130
      %v143 = vadd.f32 %v131, %v132
      %v144 = vadd.f32 %v133, %v134
      %v145 = vadd.f32 %v135, %v136
      %v146 = vadd.f32 %v137, %v138
      %155 = vrot.lane.b32.xlu0 %v139, 124
      %v156 = vpop.permute.xlu0 %155
      %157 = vrot.lane.b32.xlu0 %v140, 124
      %v158 = vpop.permute.xlu0 %157
      %159 = vrot.lane.b32.xlu0 %v141, 124
      %v160 = vpop.permute.xlu0 %159
      %161 = vrot.lane.b32.xlu0 %v142, 124
      %v162 = vpop.permute.xlu0 %161
      %163 = vrot.lane.b32.xlu0 %v143, 124
      %v164 = vpop.permute.xlu0 %163
      %165 = vrot.lane.b32.xlu0 %v144, 124
      %v166 = vpop.permute.xlu0 %165
      %167 = vrot.lane.b32.xlu0 %v145, 124
      %v168 = vpop.permute.xlu0 %167
      %169 = vrot.lane.b32.xlu0 %v146, 124
      %v170 = vpop.permute.xlu0 %169
      %v179 = vadd.f32 %v139, %v156
      %v180 = vadd.f32 %v140, %v158
      %v181 = vadd.f32 %v141, %v160
      %v182 = vadd.f32 %v142, %v162
      %v183 = vadd.f32 %v143, %v164
      %v184 = vadd.f32 %v144, %v166
      %v185 = vadd.f32 %v145, %v168
      %v186 = vadd.f32 %v146, %v170
      %v187 = vmul.f32 %v179, 0.25
      %v188 = vmul.f32 %v180, 0.25
      %v189 = vmul.f32 %v181, 0.25
      %v190 = vmul.f32 %v182, 0.25
      %v191 = vmul.f32 %v183, 0.25
      %v192 = vmul.f32 %v184, 0.25
      %v193 = vmul.f32 %v185, 0.25
      %v194 = vmul.f32 %v186, 0.25
      %vm195 = vcmask 31744
      %196 = vst.msk [vmem:[%s121] sm:$0xff] %vm195, %v187
      %197 = vst.msk [vmem:[%s121 + $0x8] sm:$0xff] %vm195, %v188
      %198 = vst.msk [vmem:[%s121 + $0x10] sm:$0xff] %vm195, %v189
      %199 = vst.msk [vmem:[%s121 + $0x18] sm:$0xff] %vm195, %v190
      %200 = vst.msk [vmem:[%s121 + $0x20] sm:$0xff] %vm195, %v191
      %201 = vst.msk [vmem:[%s121 + $0x28] sm:$0xff] %vm195, %v192
      %202 = vst.msk [vmem:[%s121 + $0x30] sm:$0xff] %vm195, %v193
      %203 = vst.msk [vmem:[%s121 + $0x38] sm:$0xff] %vm195, %v194
      %s204 = smul.u32 8, %s12
      %p205 = scmp.lt.s32.totalorder %s204, 15
      %s206 = scalar_select %p205, %s204, 15
      %s207 = smul.addr %s206, 8
      %s208 = scalar_lea.vmem %s1, %s207
      // Predicated region
      $region25: #{tpu_custom_call.1} parent=23 // pred_check
        %p209 = pneg %p56
      $region26: #{tpu_custom_call.1} parent=23 // pred_check_branch
        %211 = sbr.rel (%p209) target = $region28
      $region27: #{tpu_custom_call.1} parent=23 // pred_region
        %s212 = smul.u32 8, %s12
      $region28: #{tpu_custom_call.1} parent=23 // pred_fallthru
        _
    $region24: #{tpu_custom_call.1} parent=5 // pred_fallthru
      _
    %p213 = scmp.le.s32.totalorder 2, %s7
    // Predicated region
    $region29: #{tpu_custom_call.1} parent=5 // pred_check
      %p214 = pneg %p213
    $region30: #{tpu_custom_call.1} parent=5 // pred_check_branch
      %216 = sbr.rel (%p214) target = $region32
    $region31: #{tpu_custom_call.1} parent=5 // pred_region
      %s217 = ssub.s32 %s7, 2
      // Predicated region
      $region33: #{tpu_custom_call.1} parent=31 // pred_check
        %p218 = pneg %p62
      $region34: #{tpu_custom_call.1} parent=31 // pred_check_branch
        %220 = sbr.rel (%p218) target = $region36
      $region35: #{tpu_custom_call.1} parent=31 // pred_region
        %s221 = smul.u32 8, %s13
        %p222 = scmp.lt.s32.totalorder %s221, 15
        %s223 = scalar_select %p222, %s221, 15
        %s224 = smul.addr %s223, 8
        %s225 = scalar_lea.vmem %s1, %s224
      $region36: #{tpu_custom_call.1} parent=31 // pred_fallthru
        _
    $region32: #{tpu_custom_call.1} parent=5 // pred_fallthru
      _
  $region6: #{tpu_custom_call.1} parent=0 // loop_footer
    %s11 = sadd.s32 1, %s7
  $region7: #{tpu_custom_call.1} parent=0 // loop_footer_branch
    %6 = sbr.rel target = $region3
  $region8: #{tpu_custom_call.1} parent=0 // loop_exit
    _

</llo_original>
